<compile_context>
chip_gen: v7x
topology: tpu7x:2x2x1
jax: 0.10.0
libtpu: 0.0.40
codegen_flags: <defaults>
</compile_context>

<pallas_src>
import functools

import jax
import jax.numpy as jnp
from jax.experimental import pallas as pl
from jax.experimental.pallas import tpu as pltpu

EPS = 1e-6


# ----------------------------------------------------------------------------
# Kernel bodies
# ----------------------------------------------------------------------------
def _l2norm_kernel_f32scale(x_ref, o_ref):
    # x_ref / o_ref: (tile_rows, D) VMEM tiles; D is the full normalized axis.
    xf = x_ref[...].astype(jnp.float32)
    sumsq = jnp.sum(xf * xf, axis=-1, keepdims=True)              # XLU reduce
    inv = jax.lax.rsqrt(sumsq * (1.0 / x_ref.shape[-1]) + EPS)    # EUP rsqrt
    o_ref[...] = (xf * inv).astype(o_ref.dtype)


def _l2norm_kernel_lowprec_scale(x_ref, o_ref):
    # f32 accumulation for the reduction; final scale in the input dtype
    # (bf16 VALU on v6e/v7x) -> smaller vreg/VMEM footprint on the store path.
    x = x_ref[...]
    xf = x.astype(jnp.float32)
    sumsq = jnp.sum(xf * xf, axis=-1, keepdims=True)
    inv = jax.lax.rsqrt(sumsq * (1.0 / x_ref.shape[-1]) + EPS)
    o_ref[...] = x * inv.astype(x_ref.dtype)


def _l2norm_ref(x):
    """Plain-JAX reference / fallback (also used for small lane-sparse D)."""
    xf = x.astype(jnp.float32)
    inv = jax.lax.rsqrt(jnp.mean(xf * xf, axis=-1, keepdims=True) + EPS)
    return (xf * inv).astype(x.dtype)


# ----------------------------------------------------------------------------
# Chip / tiling policy
# ----------------------------------------------------------------------------
def _round_up(v, m):
    return ((v + m - 1) // m) * m


@functools.lru_cache(maxsize=1)
def _chip_info():
    """Returns (kind, num_tensorcores, target_tile_bytes, vmem_cap_bytes)."""
    kind = ""
    try:
        kind = jax.devices()[0].device_kind.lower()
    except Exception:
        pass

    if "v7" in kind:
        num_tc, target_tile_bytes, per_tc_vmem = 2, 4 << 20, 64 << 20
    elif "v6" in kind:
        num_tc, target_tile_bytes, per_tc_vmem = 1, 2 << 20, 128 << 20
    elif "v5" in kind:
        num_tc, target_tile_bytes, per_tc_vmem = 1, 1 << 20, 128 << 20
    else:  # unknown / future chip: conservative defaults
        num_tc, target_tile_bytes, per_tc_vmem = 1, 2 << 20, 64 << 20

    vmem_cap = per_tc_vmem
    try:
        queried = int(pltpu.get_tpu_info().vmem_capacity_bytes)
        # Guard against the query returning per-chip bytes (2 TCs on v7x):
        # never assume more than the per-TC physical capacity.
        vmem_cap = min(queried, per_tc_vmem) if queried > 0 else per_tc_vmem
    except Exception:
        pass
    return kind, num_tc, target_tile_bytes, vmem_cap


def _bytes_per_row(d, itemsize):
    # Pipelined buffers: 2 input + 2 output at the *input* dtype, plus ~2 f32
    # temporaries (cast + product) for the compute inside the kernel body.
    return d * (4 * itemsize + 2 * 4)


def _choose_tile_rows(rows, d, itemsize, vmem_cap, num_tc, target_tile_bytes):
    # Sublane packing: (8,128) f32, (16,128) bf16, (32,128) int8/fp8.
    row_align = max(8, 32 // itemsize)

    budget = (vmem_cap * 3) // 4  # leave headroom for internal scratch etc.
    budget_rows = budget // _bytes_per_row(d, itemsize)
    if budget_rows < rows and budget_rows < row_align:
        return None  # even the smallest legal tile blows the budget

    # Byte-targeted tile: make each DMA several MiB so the fixed ~0.35 us
    # per-grid-step overhead is amortized (worst on v7x's ~3.2 TB/s HBM).
    tile_rows = max(row_align, target_tile_bytes // (d * itemsize))
    tile_rows = min(tile_rows, budget_rows)

    # Megacore (v7x, 2 TCs): target >=2 blocks per core so input DMA, compute
    # and output DMA overlap. Single-TC chips keep the biggest tile (the grid
    # is just a serial loop there; splitting is pure overhead).
    if num_tc >= 2:
        min_steps = 2 * num_tc
        if rows > min_steps * row_align:
            tile_rows = min(tile_rows, _round_up(pl.cdiv(rows, min_steps), row_align))

    if tile_rows >= rows:
        return rows  # single block == full array dims -> always legal
    return max(row_align, (tile_rows // row_align) * row_align)


# ----------------------------------------------------------------------------
# Public entry point
# ----------------------------------------------------------------------------
def l2norm(x: jnp.ndarray) -> jnp.ndarray:
    """torch-style L2Norm: x * rsqrt(mean(x**2, -1, keepdims=True) + eps)."""
    orig_shape = x.shape
    D = orig_shape[-1]
    rows = 1
    for s in orig_shape[:-1]:
        rows *= s

    itemsize = jnp.dtype(x.dtype).itemsize
    kind, num_tc, target_tile_bytes, vmem_cap = _chip_info()

    # Small lane-sparse last dims lower to masked vst.msk stores and waste most
    # of the store bandwidth; plain XLA is better there. For large D the masked
    # tail is a few percent, so keep the tuned Pallas path.
    if rows == 0 or (D % 128 != 0 and D < 512):
        return _l2norm_ref(x)

    tile_rows = _choose_tile_rows(rows, D, itemsize, vmem_cap, num_tc,
                                  target_tile_bytes)
    if tile_rows is None:
        return _l2norm_ref(x)

    # bf16 final multiply only where a bf16 VALU exists (v6e/v7x); keep the
    # all-f32 scale path on v5e and for f32/other inputs.
    use_lowprec_scale = (x.dtype == jnp.bfloat16) and ("v5" not in kind)
    kernel = _l2norm_kernel_lowprec_scale if use_lowprec_scale else _l2norm_kernel_f32scale

    x2d = x.reshape(rows, D)
    grid = (pl.cdiv(rows, tile_rows),)  # partial last block handled by Pallas

    # VMEM limit from the actual footprint (+50% margin), not chip capacity.
    footprint = _round_up(tile_rows, 8) * D * (4 * itemsize + 2 * 4)
    vmem_limit = int(min(vmem_cap, max(footprint * 3 // 2, 16 << 20)))

    # Pure HBM streaming op; give XLA an honest cost hint.
    cost = pl.CostEstimate(
        flops=3 * rows * D,
        transcendentals=rows,
        bytes_accessed=2 * rows * D * itemsize,
    )

    out2d = pl.pallas_call(
        kernel,
        out_shape=jax.ShapeDtypeStruct((rows, D), x.dtype),
        grid_spec=pltpu.PrefetchScalarGridSpec(
            num_scalar_prefetch=0,
            grid=grid,
            in_specs=[pl.BlockSpec((tile_rows, D), lambda i: (i, 0))],
            out_specs=pl.BlockSpec((tile_rows, D), lambda i: (i, 0)),
        ),
        compiler_params=pltpu.CompilerParams(
            dimension_semantics=("parallel",),
            vmem_limit_bytes=vmem_limit,
        ),
        cost_estimate=cost,
    )(x2d)

    return out2d.reshape(orig_shape)


if __name__ == "__main__":
    key = jax.random.PRNGKey(0)
    k1, k2, k3, k4 = jax.random.split(key, 4)

    # Primary: lane-dense hidden dim (multiple of 128) -> Pallas path.
    x = jax.random.normal(k1, (2, 8, 256), dtype=jnp.float32)
    out = jax.block_until_ready(l2norm(x))
    assert out.shape == x.shape and out.dtype == x.dtype
    assert jnp.allclose(out, _l2norm_ref(x), atol=1e-5, rtol=1e-5)

    # Ragged row count -> exercises the partial last block (cdiv grid, no pad).
    x2 = jax.random.normal(k2, (5, 4, 128), dtype=jnp.float32)
    out2 = jax.block_until_ready(l2norm(x2))
    assert jnp.allclose(out2, _l2norm_ref(x2), atol=1e-5, rtol=1e-5)

    # bf16 input (f32 accumulation; bf16 final scale on v6e/v7x).
    x3 = jax.random.normal(k3, (2, 8, 256), dtype=jnp.bfloat16)
    out3 = jax.block_until_ready(l2norm(x3))
    assert out3.dtype == jnp.bfloat16
    assert jnp.allclose(out3.astype(jnp.float32),
                        _l2norm_ref(x3).astype(jnp.float32),
                        atol=2e-2, rtol=2e-2)

    # Small / lane-sparse hidden dim (D=32) -> plain-JAX fallback path.
    x4 = jax.random.normal(k1, (2, 8, 32), dtype=jnp.float32)
    out4 = jax.block_until_ready(l2norm(x4))
    assert jnp.allclose(out4, _l2norm_ref(x4), atol=1e-5, rtol=1e-5)

    # Large non-multiple-of-128 hidden dim (D=576 >= 512) -> Pallas path with
    # masked tail stores.
    x5 = jax.random.normal(k4, (2, 4, 576), dtype=jnp.float32)
    out5 = jax.block_until_ready(l2norm(x5))
    assert jnp.allclose(out5, _l2norm_ref(x5), atol=1e-5, rtol=1e-5)

    print("KERNEL_OK")
</pallas_src>

<mosaic_0001>
module attributes {stable_mosaic.version = 11 : i64} {
  func.func @_l2norm_kernel_f32scale(%arg0: i32, %arg1: memref<16x256xf32, #tpu.memory_space<vmem>>, %arg2: memref<16x256xf32, #tpu.memory_space<vmem>>) attributes {dimension_semantics = [#tpu.dimension_semantics<parallel>], iteration_bounds = array<i64: 1>, scalar_prefetch = 0 : i64, scratch_operands = 0 : i64, tpu.core_type = #tpu.core_type<tc>, window_params = [{transform_indices = @transform_0, window_bounds = array<i64: 16, 256>}, {transform_indices = @transform_1, window_bounds = array<i64: 16, 256>}]} {
    %c0 = arith.constant 0 : index
    %c0_0 = arith.constant 0 : index
    %0 = vector.load %arg1[%c0, %c0_0] : memref<16x256xf32, #tpu.memory_space<vmem>>, vector<16x256xf32>
    %1 = arith.mulf %0, %0 : vector<16x256xf32>
    %cst = arith.constant dense<0.000000e+00> : vector<16xf32>
    %2 = vector.multi_reduction <add>, %1, %cst [1] : vector<16x256xf32> to vector<16xf32>
    %3 = vector.shape_cast %2 : vector<16xf32> to vector<16x1xf32>
    %cst_1 = arith.constant 3.906250e-03 : f32
    %4 = vector.broadcast %cst_1 : f32 to vector<16x1xf32>
    %5 = arith.mulf %3, %4 : vector<16x1xf32>
    %cst_2 = arith.constant 9.99999997E-7 : f32
    %6 = vector.broadcast %cst_2 : f32 to vector<16x1xf32>
    %7 = arith.addf %5, %6 : vector<16x1xf32>
    %8 = math.rsqrt %7 : vector<16x1xf32>
    %9 = vector.broadcast %8 : vector<16x1xf32> to vector<16x256xf32>
    %10 = arith.mulf %0, %9 : vector<16x256xf32>
    %c0_3 = arith.constant 0 : index
    %c0_4 = arith.constant 0 : index
    %11 = vector.load %arg2[%c0_3, %c0_4] : memref<16x256xf32, #tpu.memory_space<vmem>>, vector<16x256xf32>
    tpu.vector_store %arg2[%c0_3, %c0_4], %10 {strides = array<i32>} : memref<16x256xf32, #tpu.memory_space<vmem>>, vector<16x256xf32>,
    return
  }
  func.func @transform_0(%arg0: i32) -> (i32, i32) {
    %c0_i32 = arith.constant 0 : i32
    %c0_i32_0 = arith.constant 0 : i32
    return %arg0, %c0_i32 : i32, i32
  }
  func.func @transform_1(%arg0: i32) -> (i32, i32) {
    %c0_i32 = arith.constant 0 : i32
    %c0_i32_0 = arith.constant 0 : i32
    return %arg0, %c0_i32 : i32, i32
  }
}

</mosaic_0001>

<llo_original>
// kernel: tpu_custom_call.1
$region0: #{tpu_custom_call.1}
  #allocation0 [shape = 'u32[]', space=smem, size = 0x4, offset = 0x4, fixed_abs, tag = 'smem constant byte address 0x4 - core index']
  #allocation1 [shape = 'u32[144,128]{1,0:T(1,128)}', space=vmem, size = 0x12000, scoped, tag = 'internal scratch']
  %s0 = inlined_call_operand.hbm [shape: f32[16,256], index: 0, kind: input, shape index: {}]
  %s1 = inlined_call_operand.hbm [shape: f32[16,256], index: 1, kind: output, shape index: {}]
  %s2 = sld [smem:[#allocation0]]
  $region18: #{tpu_custom_call.1} parent=0
    _
  %s4 = ssub.s32 1, %s2
  %s5 = scalar_select 0, %s4, %s2
  $region1: #{tpu_custom_call.1} parent=0
    #allocation2 [shape = 'u8[16384]{0}', space=vmem, size = 0x4000, scoped, tag = 'input window, operand 0, single buffered']
    #allocation3 [shape = 's32[1]{0}', space=sflag, size = 0x4, scoped, tag = 'scoped memory for tpu_custom_call.1']
    #allocation4 [shape = 's32[1]{0}', space=sflag, size = 0x4, scoped, tag = 'scoped memory for tpu_custom_call.1']
    #allocation5 [shape = 'u8[16384]{0}', space=vmem, size = 0x4000, scoped, tag = 'output window, operand 0, single buffered']
    %6 = vsyncpa [#allocation3], 0
    %7 = vsyncpa [#allocation4], 0
    // Predicated region
    $region2: #{tpu_custom_call.1} parent=1 // pred_check
      _
    $region3: #{tpu_custom_call.1} parent=1 // pred_check_branch
      %9 = sbr.rel (0) target = $region5
    $region4: #{tpu_custom_call.1} parent=1 // pred_region
      %s11 = ssub.s32 512, 512
      %12 = vsyncadd [#allocation3], %s11
      %s13 = sshll.u32 [#allocation2], 4
      %s14 = int_to_ptr.vmem [resolvable:$true] %s13
      %19 = dma.hbm_to_vmem [thread:$0]  %s0, 512, %s14, [#allocation3], 256, 256, 16
    $region5: #{tpu_custom_call.1} parent=1 // pred_fallthru
      _
    // Predicated region
    $region6: #{tpu_custom_call.1} parent=1 // pred_check
      _
    $region7: #{tpu_custom_call.1} parent=1 // pred_check_branch
      %21 = sbr.rel (0) target = $region9
    $region8: #{tpu_custom_call.1} parent=1 // pred_region
      %22 = dma.done [#allocation3], 512
    $region9: #{tpu_custom_call.1} parent=1 // pred_fallthru
      _
    %v23 = vld [vmem:[#allocation2] sm:$0xff]
    %v24 = vld [vmem:[#allocation2 + $0x8] sm:$0xff]
    %v25 = vld [vmem:[#allocation2 + $0x10] sm:$0xff]
    %v26 = vld [vmem:[#allocation2 + $0x18] sm:$0xff]
    %v27 = vmul.f32 %v23, %v23
    %v28 = vmul.f32 %v24, %v24
    %v29 = vmul.f32 %v25, %v25
    %v30 = vmul.f32 %v26, %v26
    %v31 = vadd.f32 %v27, %v28
    %32 = vadd.xlane.f32.xlu0 %v31
    %v33 = vpop.xlane.xlu0 %32
    %v34 = vadd.f32 %v29, %v30
    %35 = vadd.xlane.f32.xlu0 %v34
    %v36 = vpop.xlane.xlu0 %35
    %v37 = vmul.f32 %v33, 0.00390625
    %v38 = vmul.f32 %v36, 0.00390625
    %v39 = vadd.f32 %v37, 1e-06
    %v40 = vadd.f32 %v38, 1e-06
    %v41 = vrsqrt.pop %v39
    %v42 = vrsqrt.pop %v40
    %v43 = vmul.f32 %v23, %v41
    %v44 = vmul.f32 %v24, %v41
    %v45 = vmul.f32 %v25, %v42
    %v46 = vmul.f32 %v26, %v42
    %47 = vst [vmem:[#allocation5] sm:$0xff] %v43
    %48 = vst [vmem:[#allocation5 + $0x8] sm:$0xff] %v44
    %49 = vst [vmem:[#allocation5 + $0x10] sm:$0xff] %v45
    %50 = vst [vmem:[#allocation5 + $0x18] sm:$0xff] %v46
    // Predicated region
    $region10: #{tpu_custom_call.1} parent=1 // pred_check
      _
    $region11: #{tpu_custom_call.1} parent=1 // pred_check_branch
      %52 = sbr.rel (0) target = $region13
    $region12: #{tpu_custom_call.1} parent=1 // pred_region
      %s54 = ssub.s32 512, 512
      %55 = vsyncadd [#allocation4], %s54
      %s56 = sshll.u32 [#allocation5], 4
      %s57 = int_to_ptr.vmem [resolvable:$true] %s56
      %62 = dma.vmem_to_hbm [thread:$0]  %s57, 512, %s1, [#allocation4], 256, 256, 16
    $region13: #{tpu_custom_call.1} parent=1 // pred_fallthru
      _
    // Predicated region
    $region14: #{tpu_custom_call.1} parent=1 // pred_check
      _
    $region15: #{tpu_custom_call.1} parent=1 // pred_check_branch
      %64 = sbr.rel (0) target = $region17
    $region16: #{tpu_custom_call.1} parent=1 // pred_region
      %65 = dma.done [#allocation4], 512
    $region17: #{tpu_custom_call.1} parent=1 // pred_fallthru
      _
    %66 = vsyncpa [#allocation3], 1
    %67 = vsyncpa [#allocation4], 1

</llo_original>
